<compile_context>
chip_gen: v7x
topology: tpu7x:2x2x1
jax: 0.10.0
libtpu: 0.0.40
codegen_flags: <defaults>
</compile_context>

<pallas_src>
import jax
import jax.numpy as jnp
from jax.experimental import pallas as pl
from jax.experimental.pallas import tpu as pltpu


# ----------------------------- Pallas kernel -----------------------------

def _mlp_score_kernel(ent_ref, feat_ref, w1a_ref, w1b_ref, b1_ref,
                      w2_ref, w2a_ref, w2b_ref, out_ref):
    """score = 3 + 2*tanh(fc2(relu(fc1(h0)) + h0)) for one batch tile.

    Layout: batch lives on the lane axis.
      ent_ref/feat_ref : [r, TB]      (h0^T split into its two halves)
      w1a/w1b          : [2r, r]      (W1[:, :r], W1[:, r:])
      b1               : [2r, 1]
      w2/w2a/w2b       : [2r,1]/[r,1] (fc2 weight column and its halves)
      out_ref          : [1, TB]
    """
    ent = ent_ref[...]                                        # [r, TB]
    feat = feat_ref[...]                                      # [r, TB]

    # fc1 (transposed): z1^T = W1[:, :r] @ ent^T + W1[:, r:] @ feat^T + b1
    z1 = (jnp.dot(w1a_ref[...], ent, preferred_element_type=jnp.float32)
          + jnp.dot(w1b_ref[...], feat, preferred_element_type=jnp.float32)
          + b1_ref[...])                                      # [2r, TB]
    h1r = jnp.maximum(z1, 0.0)                                # relu(fc1(h0))

    # fc2 (out-width 1, no bias) as VPU mul + sublane reduce.  The residual
    # "+ h0" distributes through the linear map:
    #   h1 @ w2^T = relu(z1) @ w2^T + ent @ w2[:, :r]^T + feat @ w2[:, r:]^T
    e = (jnp.sum(h1r * w2_ref[...], axis=0, keepdims=True)
         + jnp.sum(ent * w2a_ref[...], axis=0, keepdims=True)
         + jnp.sum(feat * w2b_ref[...], axis=0, keepdims=True))   # [1, TB]

    # tanh_modified(e, 5) == (5*exp(2e)+1)/(exp(2e)+1) == 3 + 2*tanh(e)
    out_ref[...] = 3.0 + 2.0 * jnp.tanh(e)


def _choose_tiling(B, max_tile=1024):
    """Pad batch to a multiple of 128 lanes and pick a lane-dense batch tile.

    Tiles are multiples of 128 (unmasked full-width stores), capped at
    `max_tile` (stays far inside the scoped-VMEM limit, also on v7x's 64 MiB),
    and we aim for >= 2 grid steps once there is enough work so both v7x
    TensorCores get a share of the "parallel" grid axis.
    """
    B_pad = ((B + 127) // 128) * 128
    tile_b = min(B_pad, max_tile)
    if B_pad >= 2 * 128 and tile_b == B_pad:
        tile_b = B_pad // 2
    tile_b = max(128, (tile_b // 128) * 128)
    while B_pad % tile_b:            # keep tile a 128-multiple dividing B_pad
        tile_b -= 128
    return B_pad, tile_b


def mlp_score(ent_t, feat_t, w1a, w1b, b1c, w2c, w2ca, w2cb, *, tile_b):
    """ent_t/feat_t: [r, B_pad] -> scores [B_pad] (lane-dense output)."""
    r, B_pad = ent_t.shape
    H = 2 * r
    assert B_pad % tile_b == 0
    num_tiles = B_pad // tile_b

    out = pl.pallas_call(
        _mlp_score_kernel,
        out_shape=jax.ShapeDtypeStruct((1, B_pad), jnp.float32),
        grid_spec=pltpu.PrefetchScalarGridSpec(
            num_scalar_prefetch=0,
            grid=(num_tiles,),
            in_specs=[
                pl.BlockSpec((r, tile_b), lambda i: (0, i)),   # ent^T tile
                pl.BlockSpec((r, tile_b), lambda i: (0, i)),   # feat^T tile
                pl.BlockSpec((H, r), lambda i: (0, 0)),        # W1[:, :r] (resident)
                pl.BlockSpec((H, r), lambda i: (0, 0)),        # W1[:, r:] (resident)
                pl.BlockSpec((H, 1), lambda i: (0, 0)),        # b1 column
                pl.BlockSpec((H, 1), lambda i: (0, 0)),        # w2 column
                pl.BlockSpec((r, 1), lambda i: (0, 0)),        # w2[:, :r] column
                pl.BlockSpec((r, 1), lambda i: (0, 0)),        # w2[:, r:] column
            ],
            out_specs=pl.BlockSpec((1, tile_b), lambda i: (0, i)),
        ),
        compiler_params=pltpu.CompilerParams(
            dimension_semantics=("parallel",)),
    )(ent_t, feat_t, w1a, w1b, b1c, w2c, w2ca, w2cb)
    return out[0]                                              # [B_pad]


# --------------------------- Parameter setup ------------------------------

def _prep_head(w1, b1, w2, r):
    """Pre-shape one (fc1, fc2) head for the kernel's batch-on-lanes layout."""
    return dict(
        w1a=w1[:, :r],            # [2r, r]
        w1b=w1[:, r:],            # [2r, r]
        b1c=b1[:, None],          # [2r, 1]
        w2c=w2.T,                 # [2r, 1]
        w2ca=w2[:, :r].T,         # [r, 1]
        w2cb=w2[:, r:].T,         # [r, 1]
    )


def init_params(key, X, Y, m, n, p, r):
    h0_dim = 2 * r
    ks = jax.random.split(key, 9)
    norm = lambda k, shape: 0.01 * jax.random.normal(k, shape, jnp.float32)

    u_f_fc1_w = norm(ks[3], (h0_dim, h0_dim))   # torch Linear weight [out, in]
    u_f_fc1_b = norm(ks[4], (h0_dim,))
    u_f_fc2_w = norm(ks[5], (1, h0_dim))
    i_f_fc1_w = norm(ks[6], (h0_dim, h0_dim))
    i_f_fc1_b = norm(ks[7], (h0_dim,))
    i_f_fc2_w = norm(ks[8], (1, h0_dim))

    params = {
        "X": X.astype(jnp.float32),
        "Y": Y.astype(jnp.float32),
        # Embedding tables stored transposed ([r, rows]) so the per-call gather
        # lands directly in the kernel's batch-on-lanes layout.
        "Ut": norm(ks[0], (m, r)).T,
        "It": norm(ks[1], (n, r)).T,
        "Ft": norm(ks[2], (p, r)).T,
        # Raw torch-layout weights (kept for the pure-JAX reference).
        "u_f_fc1_w": u_f_fc1_w, "u_f_fc1_b": u_f_fc1_b, "u_f_fc2_w": u_f_fc2_w,
        "i_f_fc1_w": i_f_fc1_w, "i_f_fc1_b": i_f_fc1_b, "i_f_fc2_w": i_f_fc2_w,
        # Kernel-ready (pre-split / pre-transposed) weight packs — done once
        # at init, not per forward call.
        "u_f_pack": _prep_head(u_f_fc1_w, u_f_fc1_b, u_f_fc2_w, r),
        "i_f_pack": _prep_head(i_f_fc1_w, i_f_fc1_b, i_f_fc2_w, r),
    }
    return params


# ------------------------------ Forward -----------------------------------

def embedding_net_forward(params, data_pair, mode):
    """Mirrors EmbeddingNet.forward. Returns (pre_score [B,1], gt_score [B,1])."""
    idx0 = data_pair[:, 0]
    idx1 = data_pair[:, 1]
    if mode == "u_f":
        gt_score = params["X"][idx0, idx1][:, None]
        ent_t = jnp.take(params["Ut"], idx0, axis=1)        # [r, B]
        pack = params["u_f_pack"]
    elif mode == "i_f":
        gt_score = params["Y"][idx0, idx1][:, None]
        ent_t = jnp.take(params["It"], idx0, axis=1)        # [r, B]
        pack = params["i_f_pack"]
    else:
        raise ValueError("Err: wrong mode. Has to be u_f or i_f.")

    feat_t = jnp.take(params["Ft"], idx1, axis=1)           # [r, B]

    B = idx0.shape[0]
    B_pad, tile_b = _choose_tiling(B)
    if B_pad != B:
        pad = B_pad - B
        ent_t = jnp.pad(ent_t, ((0, 0), (0, pad)))
        feat_t = jnp.pad(feat_t, ((0, 0), (0, pad)))

    # fc1 stays f32 here; at H = 2r = 32 the matmul is tiny.  Cast ent/feat and
    # w1a/w1b to bf16 (accumulate f32) if r grows and accuracy permits.
    scores = mlp_score(ent_t, feat_t, tile_b=tile_b, **pack)   # [B_pad]
    pre_score = scores[:B, None]                               # [B, 1]
    return pre_score, gt_score


# Pure-JAX reference (original exp-based tanh_modified) for a sanity check.
def _ref_forward(params, data_pair, mode):
    idx0, idx1 = data_pair[:, 0], data_pair[:, 1]
    if mode == "u_f":
        gt = params["X"][idx0, idx1][:, None]
        ent = params["Ut"].T[idx0]
        w1, b1, w2 = params["u_f_fc1_w"], params["u_f_fc1_b"], params["u_f_fc2_w"]
    else:
        gt = params["Y"][idx0, idx1][:, None]
        ent = params["It"].T[idx0]
        w1, b1, w2 = params["i_f_fc1_w"], params["i_f_fc1_b"], params["i_f_fc2_w"]
    h0 = jnp.concatenate([ent, params["Ft"].T[idx1]], axis=1)
    h1 = jax.nn.relu(h0 @ w1.T + b1) + h0
    e = h1 @ w2.T
    ex = jnp.exp(2.0 * e)
    return (5.0 * ex + 1.0) / (ex + 1.0), gt


# ------------------------------- Main --------------------------------------

if __name__ == "__main__":
    # Small synthetic problem: m users, n items, p features, embedding dim r.
    m, n, p, r = 6, 7, 5, 16
    B = 8

    key = jax.random.PRNGKey(0)
    kx, ky, kp, kd0, kd1 = jax.random.split(key, 5)

    X = jax.random.uniform(kx, (m, p), jnp.float32)   # user-feature scores
    Y = jax.random.uniform(ky, (n, p), jnp.float32)   # item-feature scores
    params = init_params(kp, X, Y, m, n, p, r)

    # data_pair[:, 0] indexes users (or items), data_pair[:, 1] indexes features.
    data_pair_u = jnp.stack(
        [jax.random.randint(kd0, (B,), 0, m),
         jax.random.randint(kd1, (B,), 0, p)], axis=1).astype(jnp.int32)
    data_pair_i = jnp.stack(
        [jax.random.randint(kd0, (B,), 0, n),
         jax.random.randint(kd1, (B,), 0, p)], axis=1).astype(jnp.int32)

    fwd = jax.jit(embedding_net_forward, static_argnames=("mode",))

    pre_u, gt_u = fwd(params, data_pair_u, "u_f")
    pre_i, gt_i = fwd(params, data_pair_i, "i_f")
    jax.block_until_ready((pre_u, gt_u, pre_i, gt_i))

    # Correctness check against pure-JAX reference.
    ref_pre_u, ref_gt_u = _ref_forward(params, data_pair_u, "u_f")
    ref_pre_i, ref_gt_i = _ref_forward(params, data_pair_i, "i_f")
    assert pre_u.shape == (B, 1) and gt_u.shape == (B, 1)
    assert jnp.allclose(pre_u, ref_pre_u, atol=1e-5)
    assert jnp.allclose(gt_u, ref_gt_u, atol=1e-6)
    assert jnp.allclose(pre_i, ref_pre_i, atol=1e-5)
    assert jnp.allclose(gt_i, ref_gt_i, atol=1e-6)

    print("KERNEL_OK")
</pallas_src>

<mosaic_0001>
module attributes {stable_mosaic.version = 11 : i64} {
  func.func @_mlp_score_kernel(%arg0: i32, %arg1: memref<16x128xf32, #tpu.memory_space<vmem>>, %arg2: memref<16x128xf32, #tpu.memory_space<vmem>>, %arg3: memref<32x16xf32, #tpu.memory_space<vmem>>, %arg4: memref<32x16xf32, #tpu.memory_space<vmem>>, %arg5: memref<32x1xf32, #tpu.memory_space<vmem>>, %arg6: memref<32x1xf32, #tpu.memory_space<vmem>>, %arg7: memref<16x1xf32, #tpu.memory_space<vmem>>, %arg8: memref<16x1xf32, #tpu.memory_space<vmem>>, %arg9: memref<1x128xf32, #tpu.memory_space<vmem>>) attributes {dimension_semantics = [#tpu.dimension_semantics<parallel>], iteration_bounds = array<i64: 1>, scalar_prefetch = 0 : i64, scratch_operands = 0 : i64, tpu.core_type = #tpu.core_type<tc>, window_params = [{transform_indices = @transform_0, window_bounds = array<i64: 16, 128>}, {transform_indices = @transform_1, window_bounds = array<i64: 16, 128>}, {pipeline_mode = #tpu.pipeline_mode<synchronous>, transform_indices = @transform_2, window_bounds = array<i64: 32, 16>}, {pipeline_mode = #tpu.pipeline_mode<synchronous>, transform_indices = @transform_3, window_bounds = array<i64: 32, 16>}, {pipeline_mode = #tpu.pipeline_mode<synchronous>, transform_indices = @transform_4, window_bounds = array<i64: 32, 1>}, {pipeline_mode = #tpu.pipeline_mode<synchronous>, transform_indices = @transform_5, window_bounds = array<i64: 32, 1>}, {pipeline_mode = #tpu.pipeline_mode<synchronous>, transform_indices = @transform_6, window_bounds = array<i64: 16, 1>}, {pipeline_mode = #tpu.pipeline_mode<synchronous>, transform_indices = @transform_7, window_bounds = array<i64: 16, 1>}, {transform_indices = @transform_8, window_bounds = array<i64: 1, 128>}]} {
    %c0 = arith.constant 0 : index
    %c0_0 = arith.constant 0 : index
    %0 = vector.load %arg1[%c0, %c0_0] : memref<16x128xf32, #tpu.memory_space<vmem>>, vector<16x128xf32>
    %c0_1 = arith.constant 0 : index
    %c0_2 = arith.constant 0 : index
    %1 = vector.load %arg2[%c0_1, %c0_2] : memref<16x128xf32, #tpu.memory_space<vmem>>, vector<16x128xf32>
    %c0_3 = arith.constant 0 : index
    %c0_4 = arith.constant 0 : index
    %2 = vector.load %arg3[%c0_3, %c0_4] : memref<32x16xf32, #tpu.memory_space<vmem>>, vector<32x16xf32>
    %cst = arith.constant dense<0.000000e+00> : vector<32x128xf32>
    %3 = tpu.matmul %2, %0, %cst {dimension_numbers = #tpu.dot_dimension_numbers<[1], [0], [0], [1], [0, 0, 1, 1], [], []>} : vector<32x16xf32>, vector<16x128xf32>, vector<32x128xf32> -> vector<32x128xf32>
    %c0_5 = arith.constant 0 : index
    %c0_6 = arith.constant 0 : index
    %4 = vector.load %arg4[%c0_5, %c0_6] : memref<32x16xf32, #tpu.memory_space<vmem>>, vector<32x16xf32>
    %cst_7 = arith.constant dense<0.000000e+00> : vector<32x128xf32>
    %5 = tpu.matmul %4, %1, %cst_7 {dimension_numbers = #tpu.dot_dimension_numbers<[1], [0], [0], [1], [0, 0, 1, 1], [], []>} : vector<32x16xf32>, vector<16x128xf32>, vector<32x128xf32> -> vector<32x128xf32>
    %6 = arith.addf %3, %5 : vector<32x128xf32>
    %c0_8 = arith.constant 0 : index
    %c0_9 = arith.constant 0 : index
    %7 = vector.load %arg5[%c0_8, %c0_9] : memref<32x1xf32, #tpu.memory_space<vmem>>, vector<32x1xf32>
    %8 = vector.broadcast %7 : vector<32x1xf32> to vector<32x128xf32>
    %9 = arith.addf %6, %8 : vector<32x128xf32>
    %cst_10 = arith.constant 0.000000e+00 : f32
    %10 = vector.broadcast %cst_10 : f32 to vector<32x128xf32>
    %11 = arith.maximumf %9, %10 : vector<32x128xf32>
    %c0_11 = arith.constant 0 : index
    %c0_12 = arith.constant 0 : index
    %12 = vector.load %arg6[%c0_11, %c0_12] : memref<32x1xf32, #tpu.memory_space<vmem>>, vector<32x1xf32>
    %13 = vector.broadcast %12 : vector<32x1xf32> to vector<32x128xf32>
    %14 = arith.mulf %11, %13 : vector<32x128xf32>
    %cst_13 = arith.constant dense<0.000000e+00> : vector<128xf32>
    %15 = vector.multi_reduction <add>, %14, %cst_13 [0] : vector<32x128xf32> to vector<128xf32>
    %16 = vector.shape_cast %15 : vector<128xf32> to vector<1x128xf32>
    %c0_14 = arith.constant 0 : index
    %c0_15 = arith.constant 0 : index
    %17 = vector.load %arg7[%c0_14, %c0_15] : memref<16x1xf32, #tpu.memory_space<vmem>>, vector<16x1xf32>
    %18 = vector.broadcast %17 : vector<16x1xf32> to vector<16x128xf32>
    %19 = arith.mulf %0, %18 : vector<16x128xf32>
    %cst_16 = arith.constant dense<0.000000e+00> : vector<128xf32>
    %20 = vector.multi_reduction <add>, %19, %cst_16 [0] : vector<16x128xf32> to vector<128xf32>
    %21 = vector.shape_cast %20 : vector<128xf32> to vector<1x128xf32>
    %22 = arith.addf %16, %21 : vector<1x128xf32>
    %c0_17 = arith.constant 0 : index
    %c0_18 = arith.constant 0 : index
    %23 = vector.load %arg8[%c0_17, %c0_18] : memref<16x1xf32, #tpu.memory_space<vmem>>, vector<16x1xf32>
    %24 = vector.broadcast %23 : vector<16x1xf32> to vector<16x128xf32>
    %25 = arith.mulf %1, %24 : vector<16x128xf32>
    %cst_19 = arith.constant dense<0.000000e+00> : vector<128xf32>
    %26 = vector.multi_reduction <add>, %25, %cst_19 [0] : vector<16x128xf32> to vector<128xf32>
    %27 = vector.shape_cast %26 : vector<128xf32> to vector<1x128xf32>
    %28 = arith.addf %22, %27 : vector<1x128xf32>
    %29 = math.tanh %28 : vector<1x128xf32>
    %cst_20 = arith.constant 2.000000e+00 : f32
    %30 = vector.broadcast %cst_20 : f32 to vector<1x128xf32>
    %31 = arith.mulf %30, %29 : vector<1x128xf32>
    %cst_21 = arith.constant 3.000000e+00 : f32
    %32 = vector.broadcast %cst_21 : f32 to vector<1x128xf32>
    %33 = arith.addf %32, %31 : vector<1x128xf32>
    %c0_22 = arith.constant 0 : index
    %c0_23 = arith.constant 0 : index
    %34 = vector.load %arg9[%c0_22, %c0_23] : memref<1x128xf32, #tpu.memory_space<vmem>>, vector<1x128xf32>
    tpu.vector_store %arg9[%c0_22, %c0_23], %33 {strides = array<i32>} : memref<1x128xf32, #tpu.memory_space<vmem>>, vector<1x128xf32>,
    return
  }
  func.func @transform_0(%arg0: i32) -> (i32, i32) {
    %c0_i32 = arith.constant 0 : i32
    %c0_i32_0 = arith.constant 0 : i32
    return %c0_i32, %arg0 : i32, i32
  }
  func.func @transform_1(%arg0: i32) -> (i32, i32) {
    %c0_i32 = arith.constant 0 : i32
    %c0_i32_0 = arith.constant 0 : i32
    return %c0_i32, %arg0 : i32, i32
  }
  func.func @transform_2(%arg0: i32) -> (i32, i32) {
    %c0_i32 = arith.constant 0 : i32
    %c0_i32_0 = arith.constant 0 : i32
    %c0_i32_1 = arith.constant 0 : i32
    return %c0_i32, %c0_i32_0 : i32, i32
  }
  func.func @transform_3(%arg0: i32) -> (i32, i32) {
    %c0_i32 = arith.constant 0 : i32
    %c0_i32_0 = arith.constant 0 : i32
    %c0_i32_1 = arith.constant 0 : i32
    return %c0_i32, %c0_i32_0 : i32, i32
  }
  func.func @transform_4(%arg0: i32) -> (i32, i32) {
    %c0_i32 = arith.constant 0 : i32
    %c0_i32_0 = arith.constant 0 : i32
    %c0_i32_1 = arith.constant 0 : i32
    return %c0_i32, %c0_i32_0 : i32, i32
  }
  func.func @transform_5(%arg0: i32) -> (i32, i32) {
    %c0_i32 = arith.constant 0 : i32
    %c0_i32_0 = arith.constant 0 : i32
    %c0_i32_1 = arith.constant 0 : i32
    return %c0_i32, %c0_i32_0 : i32, i32
  }
  func.func @transform_6(%arg0: i32) -> (i32, i32) {
    %c0_i32 = arith.constant 0 : i32
    %c0_i32_0 = arith.constant 0 : i32
    %c0_i32_1 = arith.constant 0 : i32
    return %c0_i32, %c0_i32_0 : i32, i32
  }
  func.func @transform_7(%arg0: i32) -> (i32, i32) {
    %c0_i32 = arith.constant 0 : i32
    %c0_i32_0 = arith.constant 0 : i32
    %c0_i32_1 = arith.constant 0 : i32
    return %c0_i32, %c0_i32_0 : i32, i32
  }
  func.func @transform_8(%arg0: i32) -> (i32, i32) {
    %c0_i32 = arith.constant 0 : i32
    %c0_i32_0 = arith.constant 0 : i32
    return %c0_i32, %arg0 : i32, i32
  }
}

</mosaic_0001>

<llo_original>
// kernel: embedding_net_forward.1
$region0: #{embedding_net_forward.1}
  #allocation0 [shape = 'u32[]', space=smem, size = 0x4, offset = 0x4, fixed_abs, tag = 'smem constant byte address 0x4 - core index']
  #allocation1 [shape = 'u32[144,128]{1,0:T(1,128)}', space=vmem, size = 0x12000, scoped, tag = 'internal scratch']
  %s0 = inlined_call_operand.vmem [shape: f32[16,128], index: 0, kind: input, shape index: {}]
  %s1 = inlined_call_operand.vmem [shape: f32[16,128], index: 1, kind: input, shape index: {}]
  %s2 = inlined_call_operand.vmem [shape: f32[32,16], index: 2, kind: input, shape index: {}]
  %s3 = inlined_call_operand.vmem [shape: f32[32,16], index: 3, kind: input, shape index: {}]
  %s4 = inlined_call_operand.vmem [shape: f32[32,1], index: 4, kind: input, shape index: {}]
  %s5 = inlined_call_operand.vmem [shape: f32[32,1], index: 5, kind: input, shape index: {}]
  %s6 = inlined_call_operand.vmem [shape: f32[16,1], index: 6, kind: input, shape index: {}]
  %s7 = inlined_call_operand.vmem [shape: f32[16,1], index: 7, kind: input, shape index: {}]
  %s8 = inlined_call_operand.vmem [shape: f32[1,128], index: 8, kind: output, shape index: {}]
  %s9 = sld [smem:[#allocation0]]
  $region42: #{embedding_net_forward.1} parent=0
    _
  %s11 = ssub.s32 1, %s9
  %s12 = scalar_select 0, %s11, %s9
  // Predicated region
  $region2: #{embedding_net_forward.1} parent=0 // pred_check
    _
  $region3: #{embedding_net_forward.1} parent=0 // pred_check_branch
    %14 = sbr.rel (0) target = $region5
  $region4: #{embedding_net_forward.1} parent=0 // pred_region
    _
  $region5: #{embedding_net_forward.1} parent=0 // pred_fallthru
    _
  // Predicated region
  $region6: #{embedding_net_forward.1} parent=0 // pred_check
    _
  $region7: #{embedding_net_forward.1} parent=0 // pred_check_branch
    %16 = sbr.rel (0) target = $region9
  $region8: #{embedding_net_forward.1} parent=0 // pred_region
    _
  $region9: #{embedding_net_forward.1} parent=0 // pred_fallthru
    _
  // Predicated region
  $region10: #{embedding_net_forward.1} parent=0 // pred_check
    _
  $region11: #{embedding_net_forward.1} parent=0 // pred_check_branch
    %18 = sbr.rel (0) target = $region13
  $region12: #{embedding_net_forward.1} parent=0 // pred_region
    _
  $region13: #{embedding_net_forward.1} parent=0 // pred_fallthru
    _
  // Predicated region
  $region14: #{embedding_net_forward.1} parent=0 // pred_check
    _
  $region15: #{embedding_net_forward.1} parent=0 // pred_check_branch
    %20 = sbr.rel (0) target = $region17
  $region16: #{embedding_net_forward.1} parent=0 // pred_region
    _
  $region17: #{embedding_net_forward.1} parent=0 // pred_fallthru
    _
  // Predicated region
  $region18: #{embedding_net_forward.1} parent=0 // pred_check
    _
  $region19: #{embedding_net_forward.1} parent=0 // pred_check_branch
    %22 = sbr.rel (0) target = $region21
  $region20: #{embedding_net_forward.1} parent=0 // pred_region
    _
  $region21: #{embedding_net_forward.1} parent=0 // pred_fallthru
    _
  // Predicated region
  $region22: #{embedding_net_forward.1} parent=0 // pred_check
    _
  $region23: #{embedding_net_forward.1} parent=0 // pred_check_branch
    %24 = sbr.rel (0) target = $region25
  $region24: #{embedding_net_forward.1} parent=0 // pred_region
    _
  $region25: #{embedding_net_forward.1} parent=0 // pred_fallthru
    _
  // Predicated region
  $region26: #{embedding_net_forward.1} parent=0 // pred_check
    _
  $region27: #{embedding_net_forward.1} parent=0 // pred_check_branch
    %26 = sbr.rel (0) target = $region29
  $region28: #{embedding_net_forward.1} parent=0 // pred_region
    _
  $region29: #{embedding_net_forward.1} parent=0 // pred_fallthru
    _
  // Predicated region
  $region30: #{embedding_net_forward.1} parent=0 // pred_check
    _
  $region31: #{embedding_net_forward.1} parent=0 // pred_check_branch
    %28 = sbr.rel (0) target = $region33
  $region32: #{embedding_net_forward.1} parent=0 // pred_region
    _
  $region33: #{embedding_net_forward.1} parent=0 // pred_fallthru
    _
  %v29 = vld [vmem:[%s0] sm:$0xff]
  %v30 = vld [vmem:[%s0 + $0x8] sm:$0xff]
  %v31 = vld [vmem:[%s1] sm:$0xff]
  %v32 = vld [vmem:[%s1 + $0x8] sm:$0xff]
  %v33 = vld [vmem:[%s2] sm:$0xff]
  %v34 = vld [vmem:[%s2 + $0x8] sm:$0xff]
  %v35 = vld [vmem:[%s2 + $0x10] sm:$0xff]
  %v36 = vld [vmem:[%s2 + $0x18] sm:$0xff]
  %v37 = vld [vmem:[%s3] sm:$0xff]
  %v38 = vld [vmem:[%s3 + $0x8] sm:$0xff]
  %v39 = vld [vmem:[%s3 + $0x10] sm:$0xff]
  %v40 = vld [vmem:[%s3 + $0x18] sm:$0xff]
  %vm41 = vcmask 130048
  %v43 = vsel %vm41, %v37, 0
  %v46 = vsel %vm41, %v38, 0
  %v49 = vsel %vm41, %v39, 0
  %v52 = vsel %vm41, %v40, 0
  %54 = vmatprep.subr.mxu0 0.0
  %55 = vmatpush1.msra.mxu0 %v31
  %56 = vmatprep.subr.mxu0 0.0
  %57 = vmatpush1.msra.mxu0 %v32
  %58 = vmatprep.subr.mxu0 0.0
  %59 = vmatpush1.msra.mxu0 0.0
  %60 = vmatprep.subr.mxu0 0.0
  %61 = vmatpush1.msra.mxu0 0.0
  %62 = vmatprep.subr.mxu0 0.0
  %63 = vmatpush1.msra.mxu0 0.0
  %64 = vmatprep.subr.mxu0 0.0
  %65 = vmatpush1.msra.mxu0 0.0
  %66 = vmatprep.subr.mxu0 0.0
  %67 = vmatpush1.msra.mxu0 0.0
  %68 = vmatprep.subr.mxu0 0.0
  %69 = vmatpush1.msra.mxu0 0.0
  %70 = vmatprep.subr.mxu0 0.0
  %71 = vmatpush1.msra.mxu0 0.0
  %72 = vmatprep.subr.mxu0 0.0
  %73 = vmatpush1.msra.mxu0 0.0
  %74 = vmatprep.subr.mxu0 0.0
  %75 = vmatpush1.msra.mxu0 0.0
  %76 = vmatprep.subr.mxu0 0.0
  %77 = vmatpush1.msra.mxu0 0.0
  %78 = vmatprep.subr.mxu0 0.0
  %79 = vmatpush1.msra.mxu0 0.0
  %80 = vmatprep.subr.mxu0 0.0
  %81 = vmatpush1.msra.mxu0 0.0
  %82 = vmatprep.subr.mxu0 0.0
  %83 = vmatpush1.msra.mxu0 0.0
  %84 = vmatprep.subr.mxu0 0.0
  %85 = vmatpush1.msra.mxu0 0.0
  %86 = vmatprep.subr.mxu0 0.0
  %87 = vmatpush1.msra.mxu0 0.0
  %88 = vmatprep.subr.mxu0 0.0
  %89 = vmatpush1.msra.mxu0 0.0
  %90 = vmatprep.subr.mxu0 0.0
  %91 = vmatpush1.msra.mxu0 0.0
  %92 = vmatprep.subr.mxu0 0.0
  %93 = vmatpush1.msra.mxu0 0.0
  %94 = vmatprep.subr.mxu0 0.0
  %95 = vmatpush1.msra.mxu0 0.0
  %96 = vmatprep.subr.mxu0 0.0
  %97 = vmatpush1.msra.mxu0 0.0
  %98 = vmatprep.subr.mxu0 0.0
  %99 = vmatpush1.msra.mxu0 0.0
  %100 = vmatprep.subr.mxu0 0.0
  %101 = vmatpush1.msra.mxu0 0.0
  %102 = vmatprep.subr.mxu0 0.0
  %103 = vmatpush1.msra.mxu0 0.0
  %104 = vmatprep.subr.mxu0 0.0
  %105 = vmatpush1.msra.mxu0 0.0
  %106 = vmatprep.subr.mxu0 0.0
  %107 = vmatpush1.msra.mxu0 0.0
  %108 = vmatprep.subr.mxu0 0.0
  %109 = vmatpush1.msra.mxu0 0.0
  %110 = vmatprep.subr.mxu0 0.0
  %111 = vmatpush1.msra.mxu0 0.0
  %112 = vmatprep.subr.mxu0 0.0
  %113 = vmatpush1.msra.mxu0 0.0
  %114 = vmatprep.subr.mxu0 0.0
  %115 = vmatpush1.msra.mxu0 0.0
  %116 = vmatprep.subr.mxu0 0.0
  %117 = vmatpush1.msra.mxu0 0.0
  %118 = vmatprep.mubr.f32.mxu0 0.0
  %119 = vmatmul.mubr.f32.gmra.mrb[0].mxu0 %v43
  %v120 = vpop.f32.mrb[0].mxu0
  %v121 = vadd.f32 0.0, %v120
  %v122 = vpop.f32.mrb[0].mxu0
  %123 = vmatprep.mubr.f32.mxu0 0.0
  %124 = vmatmul.mubr.f32.gmra.mrb[0].mxu0 %v46
  %v125 = vpop.f32.mrb[0].mxu0
  %v126 = vadd.f32 0.0, %v125
  %v127 = vpop.f32.mrb[0].mxu0
  %128 = vmatprep.mubr.f32.mxu0 0.0
  %129 = vmatmul.mubr.f32.gmra.mrb[0].mxu0 %v49
  %v130 = vpop.f32.mrb[0].mxu0
  %v131 = vadd.f32 0.0, %v130
  %v132 = vpop.f32.mrb[0].mxu0
  %133 = vmatprep.mubr.f32.mxu0 0.0
  %134 = vmatmul.mubr.f32.gmra.mrb[0].mxu0 %v52
  %v135 = vpop.f32.mrb[0].mxu0
  %v136 = vadd.f32 0.0, %v135
  %v137 = vpop.f32.mrb[0].mxu0
  %138 = vdwg.mxu0
  %v140 = vsel %vm41, %v33, 0
  %v143 = vsel %vm41, %v34, 0
  %v146 = vsel %vm41, %v35, 0
  %v149 = vsel %vm41, %v36, 0
  %151 = vmatprep.subr.mxu0 0.0
  %152 = vmatpush1.msra.mxu0 %v29
  %153 = vmatprep.subr.mxu0 0.0
  %154 = vmatpush1.msra.mxu0 %v30
  %155 = vmatprep.subr.mxu0 0.0
  %156 = vmatpush1.msra.mxu0 0.0
  %157 = vmatprep.subr.mxu0 0.0
  %158 = vmatpush1.msra.mxu0 0.0
  %159 = vmatprep.subr.mxu0 0.0
  %160 = vmatpush1.msra.mxu0 0.0
  %161 = vmatprep.subr.mxu0 0.0
  %162 = vmatpush1.msra.mxu0 0.0
  %163 = vmatprep.subr.mxu0 0.0
  %164 = vmatpush1.msra.mxu0 0.0
  %165 = vmatprep.subr.mxu0 0.0
  %166 = vmatpush1.msra.mxu0 0.0
  %167 = vmatprep.subr.mxu0 0.0
  %168 = vmatpush1.msra.mxu0 0.0
  %169 = vmatprep.subr.mxu0 0.0
  %170 = vmatpush1.msra.mxu0 0.0
  %171 = vmatprep.subr.mxu0 0.0
  %172 = vmatpush1.msra.mxu0 0.0
  %173 = vmatprep.subr.mxu0 0.0
  %174 = vmatpush1.msra.mxu0 0.0
  %175 = vmatprep.subr.mxu0 0.0
  %176 = vmatpush1.msra.mxu0 0.0
  %177 = vmatprep.subr.mxu0 0.0
  %178 = vmatpush1.msra.mxu0 0.0
  %179 = vmatprep.subr.mxu0 0.0
  %180 = vmatpush1.msra.mxu0 0.0
  %181 = vmatprep.subr.mxu0 0.0
  %182 = vmatpush1.msra.mxu0 0.0
  %183 = vmatprep.subr.mxu0 0.0
  %184 = vmatpush1.msra.mxu0 0.0
  %185 = vmatprep.subr.mxu0 0.0
  %186 = vmatpush1.msra.mxu0 0.0
  %187 = vmatprep.subr.mxu0 0.0
  %188 = vmatpush1.msra.mxu0 0.0
  %189 = vmatprep.subr.mxu0 0.0
  %190 = vmatpush1.msra.mxu0 0.0
  %191 = vmatprep.subr.mxu0 0.0
  %192 = vmatpush1.msra.mxu0 0.0
  %193 = vmatprep.subr.mxu0 0.0
  %194 = vmatpush1.msra.mxu0 0.0
  %195 = vmatprep.subr.mxu0 0.0
  %196 = vmatpush1.msra.mxu0 0.0
  %197 = vmatprep.subr.mxu0 0.0
  %198 = vmatpush1.msra.mxu0 0.0
  %199 = vmatprep.subr.mxu0 0.0
  %200 = vmatpush1.msra.mxu0 0.0
  %201 = vmatprep.subr.mxu0 0.0
  %202 = vmatpush1.msra.mxu0 0.0
  %203 = vmatprep.subr.mxu0 0.0
  %204 = vmatpush1.msra.mxu0 0.0
  %205 = vmatprep.subr.mxu0 0.0
  %206 = vmatpush1.msra.mxu0 0.0
  %207 = vmatprep.subr.mxu0 0.0
  %208 = vmatpush1.msra.mxu0 0.0
  %209 = vmatprep.subr.mxu0 0.0
  %210 = vmatpush1.msra.mxu0 0.0
  %211 = vmatprep.subr.mxu0 0.0
  %212 = vmatpush1.msra.mxu0 0.0
  %213 = vmatprep.subr.mxu0 0.0
  %214 = vmatpush1.msra.mxu0 0.0
  %215 = vmatprep.mubr.f32.mxu0 0.0
  %216 = vmatmul.mubr.f32.gmra.mrb[0].mxu0 %v140
  %v217 = vpop.f32.mrb[0].mxu0
  %v218 = vadd.f32 %v121, %v217
  %v219 = vpop.f32.mrb[0].mxu0
  %220 = vmatprep.mubr.f32.mxu0 0.0
  %221 = vmatmul.mubr.f32.gmra.mrb[0].mxu0 %v143
  %v222 = vpop.f32.mrb[0].mxu0
  %v223 = vadd.f32 %v126, %v222
  %v224 = vpop.f32.mrb[0].mxu0
  %225 = vmatprep.mubr.f32.mxu0 0.0
  %226 = vmatmul.mubr.f32.gmra.mrb[0].mxu0 %v146
  %v227 = vpop.f32.mrb[0].mxu0
  %v228 = vadd.f32 %v131, %v227
  %v229 = vpop.f32.mrb[0].mxu0
  %230 = vmatprep.mubr.f32.mxu0 0.0
  %231 = vmatmul.mubr.f32.gmra.mrb[0].mxu0 %v149
  %v232 = vpop.f32.mrb[0].mxu0
  %v233 = vadd.f32 %v136, %v232
  %v234 = vpop.f32.mrb[0].mxu0
  %235 = vdwg.mxu0
  %v236 = vld [vmem:[%s4] sm:$0xff]
  %v237 = vld [vmem:[%s4 + $0x8] sm:$0xff]
  %v238 = vld [vmem:[%s4 + $0x10] sm:$0xff]
  %v239 = vld [vmem:[%s4 + $0x18] sm:$0xff]
  %241 = vset.pattern.permute.xlu0 0
  %242 = vperm.xlu0 %241, %v236
  %v243 = vpop.permute.xlu0 %242
  %246 = vset.pattern.permute.xlu0 0
  %247 = vperm.xlu0 %246, %v237
  %v248 = vpop.permute.xlu0 %247
  %251 = vset.pattern.permute.xlu0 0
  %252 = vperm.xlu0 %251, %v238
  %v253 = vpop.permute.xlu0 %252
  %256 = vset.pattern.permute.xlu0 0
  %257 = vperm.xlu0 %256, %v239
  %v258 = vpop.permute.xlu0 %257
  %v260 = vadd.f32 %v218, %v243
  %v261 = vadd.f32 %v223, %v248
  %v262 = vadd.f32 %v228, %v253
  %v263 = vadd.f32 %v233, %v258
  %v264 = vmax.f32 %v260, 0.0
  %v265 = vmax.f32 %v261, 0.0
  %v266 = vmax.f32 %v262, 0.0
  %v267 = vmax.f32 %v263, 0.0
  %v268 = vld [vmem:[%s5] sm:$0xff]
  %v269 = vld [vmem:[%s5 + $0x8] sm:$0xff]
  %v270 = vld [vmem:[%s5 + $0x10] sm:$0xff]
  %v271 = vld [vmem:[%s5 + $0x18] sm:$0xff]
  %273 = vset.pattern.permute.xlu0 0
  %274 = vperm.xlu0 %273, %v268
  %v275 = vpop.permute.xlu0 %274
  %278 = vset.pattern.permute.xlu0 0
  %279 = vperm.xlu0 %278, %v269
  %v280 = vpop.permute.xlu0 %279
  %283 = vset.pattern.permute.xlu0 0
  %284 = vperm.xlu0 %283, %v270
  %v285 = vpop.permute.xlu0 %284
  %288 = vset.pattern.permute.xlu0 0
  %289 = vperm.xlu0 %288, %v271
  %v290 = vpop.permute.xlu0 %289
  %v292 = vmul.f32 %v264, %v275
  %v293 = vmul.f32 %v265, %v280
  %v294 = vmul.f32 %v266, %v285
  %v295 = vmul.f32 %v267, %v290
  %v296 = vadd.f32 %v292, %v293
  %v297 = vadd.f32 %v296, %v294
  %v298 = vadd.f32 %v297, %v295
  %v299 = vrot.slane %v298, 4
  %v300 = vadd.f32 %v298, %v299
  %v301 = vrot.slane %v300, 2
  %v302 = vadd.f32 %v300, %v301
  %v303 = vrot.slane %v302, 1
  %v304 = vadd.f32 %v302, %v303
  %v305 = vld [vmem:[%s6] sm:$0xff]
  %v306 = vld [vmem:[%s6 + $0x8] sm:$0xff]
  %308 = vset.pattern.permute.xlu0 0
  %309 = vperm.xlu0 %308, %v305
  %v310 = vpop.permute.xlu0 %309
  %313 = vset.pattern.permute.xlu0 0
  %314 = vperm.xlu0 %313, %v306
  %v315 = vpop.permute.xlu0 %314
  %v317 = vmul.f32 %v29, %v310
  %v318 = vmul.f32 %v30, %v315
  %v319 = vadd.f32 %v317, %v318
  %v320 = vrot.slane %v319, 4
  %v321 = vadd.f32 %v319, %v320
  %v322 = vrot.slane %v321, 2
  %v323 = vadd.f32 %v321, %v322
  %v324 = vrot.slane %v323, 1
  %v325 = vadd.f32 %v323, %v324
  %v326 = vadd.f32 %v304, %v325
  %v327 = vld [vmem:[%s7] sm:$0xff]
  %v328 = vld [vmem:[%s7 + $0x8] sm:$0xff]
  %330 = vset.pattern.permute.xlu0 0
  %331 = vperm.xlu0 %330, %v327
  %v332 = vpop.permute.xlu0 %331
  %335 = vset.pattern.permute.xlu0 0
  %336 = vperm.xlu0 %335, %v328
  %v337 = vpop.permute.xlu0 %336
  %v339 = vmul.f32 %v31, %v332
  %v340 = vmul.f32 %v32, %v337
  %v341 = vadd.f32 %v339, %v340
  %v342 = vrot.slane %v341, 4
  %v343 = vadd.f32 %v341, %v342
  %v344 = vrot.slane %v343, 2
  %v345 = vadd.f32 %v343, %v344
  %v346 = vrot.slane %v345, 1
  %v347 = vadd.f32 %v345, %v346
  %v348 = vadd.f32 %v326, %v347
  %v349 = vtanh.pop %v348
  %v350 = vmul.f32 %v349, 2.0
  %v351 = vadd.f32 %v350, 3.0
  %352 = vst [vmem:[%s8] sm:$0x1] %v351
  // Predicated region
  $region34: #{embedding_net_forward.1} parent=0 // pred_check
    _
  $region35: #{embedding_net_forward.1} parent=0 // pred_check_branch
    %354 = sbr.rel (0) target = $region37
  $region36: #{embedding_net_forward.1} parent=0 // pred_region
    _
  $region37: #{embedding_net_forward.1} parent=0 // pred_fallthru
    _
  // Predicated region
  $region38: #{embedding_net_forward.1} parent=0 // pred_check
    _
  $region39: #{embedding_net_forward.1} parent=0 // pred_check_branch
    %356 = sbr.rel (0) target = $region41
  $region40: #{embedding_net_forward.1} parent=0 // pred_region
    _
  $region41: #{embedding_net_forward.1} parent=0 // pred_fallthru
    _

</llo_original>
